<compile_context>
chip_gen: v7x
topology: tpu7x:2x2x1
jax: 0.10.0
libtpu: 0.0.40
codegen_flags: <defaults>
</compile_context>

<pallas_src>
import functools

import jax
import jax.numpy as jnp
from jax.experimental import pallas as pl
from jax.experimental.pallas import tpu as pltpu


# ------------------------------ kernel ---------------------------------------
def _bitparm_kernel(final: bool, x_ref, p_ref, o_ref):
    """x_ref/o_ref: (TM, TC) in the I/O dtype; p_ref: (TM, 3) f32 =
    [softplus(h), b, tanh(a)] per row (= per channel)."""
    x = x_ref[...].astype(jnp.float32)
    p = p_ref[...]                      # (TM, 3) float32
    sp_h = p[:, 0:1]                    # softplus(h), broadcast along lanes
    b = p[:, 1:2]
    y = x * sp_h + b
    if final:
        # sigmoid(y) == 0.5 * (tanh(y/2) + 1): stable, one EUP op, no divide.
        out = 0.5 * (jnp.tanh(0.5 * y) + 1.0)
    else:
        ta = p[:, 2:3]                  # tanh(a), precomputed in wrapper
        out = y + jnp.tanh(y) * ta
    o_ref[...] = out.astype(o_ref.dtype)


# ------------------------------ wrapper ---------------------------------------
def bitparm(x_nchw, h, b, a, *, final=False, tm=512, tc=2048):
    """Bitparm forward on an NCHW tensor with per-channel params h, b, a."""
    n, c, hh, ww = x_nchw.shape
    rows, cols = n * c, hh * ww
    dtype = x_nchw.dtype
    xf = x_nchw.reshape(rows, cols)     # lane-dense: H*W on the 128-lane axis

    def rup(v, m):
        return ((v + m - 1) // m) * m

    # Sublane multiple depends on dtype packing (f32: 8, bf16: 16, 8-bit: 32).
    itemsize = jnp.dtype(dtype).itemsize
    sub = {4: 8, 2: 16, 1: 32}.get(itemsize, 8)

    # Clamp tiles: multiples of (sub, 128), no larger than the (rounded) array.
    tm = max(sub, min(rup(tm, sub), rup(rows, sub)))
    tc = max(128, min(rup(tc, 128), rup(cols, 128)))

    # v7x has 2 TensorCores: make sure the grid has >= 2 blocks when possible.
    if pl.cdiv(rows, tm) * pl.cdiv(cols, tc) == 1:
        if cols > 128:
            tc = max(128, rup(pl.cdiv(cols, 2), 128))
        elif rows > sub:
            tm = max(sub, rup(pl.cdiv(rows, 2), sub))

    # Precompute the per-channel nonlinearities once (O(C), free) and pack the
    # three per-row scalars into a single (rows, 3) array -> one param DMA per
    # row block. Row r = batch*C + chan  =>  params row r is channel r % C.
    sp_h = jax.nn.softplus(jnp.asarray(h, jnp.float32).reshape(-1))     # (C,)
    b_v = jnp.asarray(b, jnp.float32).reshape(-1)                       # (C,)
    ta_v = jnp.tanh(jnp.asarray(a, jnp.float32).reshape(-1))            # (C,)
    params = jnp.tile(jnp.stack([sp_h, b_v, ta_v], axis=-1), (n, 1))    # (N*C, 3)

    grid = (pl.cdiv(rows, tm), pl.cdiv(cols, tc))

    out = pl.pallas_call(
        functools.partial(_bitparm_kernel, final),
        out_shape=jax.ShapeDtypeStruct((rows, cols), dtype),
        grid=grid,
        in_specs=[
            pl.BlockSpec((tm, tc), lambda i, j: (i, j)),
            pl.BlockSpec((tm, 3), lambda i, j: (i, 0)),
        ],
        out_specs=pl.BlockSpec((tm, tc), lambda i, j: (i, j)),
        compiler_params=pltpu.CompilerParams(
            dimension_semantics=("parallel", "parallel"),
            vmem_limit_bytes=48 * 1024 * 1024),
    )(xf, params)

    return out.reshape(n, c, hh, ww)


# --------------------------- params & reference -------------------------------
def bitparm_init(key, channel):
    """Matches torch.nn.init.normal_(..., mean=0, std=0.01) for h, b, a."""
    kh, kb, ka = jax.random.split(key, 3)
    return {
        "h": 0.01 * jax.random.normal(kh, (channel,), jnp.float32),
        "b": 0.01 * jax.random.normal(kb, (channel,), jnp.float32),
        "a": 0.01 * jax.random.normal(ka, (channel,), jnp.float32),
    }


def bitparm_ref(x_nchw, h, b, a, *, final=False):
    h = h.reshape(1, -1, 1, 1)
    b = b.reshape(1, -1, 1, 1)
    a = a.reshape(1, -1, 1, 1)
    y = x_nchw * jax.nn.softplus(h) + b
    if final:
        return jax.nn.sigmoid(y)
    return y + jnp.tanh(y) * jnp.tanh(a)


# --------------------------------- main ---------------------------------------
if __name__ == "__main__":
    key = jax.random.PRNGKey(0)
    pkey, fkey, xkey = jax.random.split(key, 3)

    channels = 4
    x = jax.random.normal(xkey, (2, channels, 16, 16), jnp.float32)   # NCHW

    p = bitparm_init(pkey, channels)        # non-final Bitparm
    pf = bitparm_init(fkey, channels)       # final Bitparm

    run = jax.jit(functools.partial(bitparm, final=False))
    run_final = jax.jit(functools.partial(bitparm, final=True))

    out = jax.block_until_ready(run(x, p["h"], p["b"], p["a"]))
    out_final = jax.block_until_ready(run_final(out, pf["h"], pf["b"], pf["a"]))

    assert out.shape == x.shape, out.shape
    assert out_final.shape == x.shape, out_final.shape
    assert out.dtype == x.dtype and out_final.dtype == x.dtype

    ref = bitparm_ref(x, p["h"], p["b"], p["a"], final=False)
    ref_final = bitparm_ref(ref, pf["h"], pf["b"], pf["a"], final=True)

    err1 = float(jnp.max(jnp.abs(out - ref)))
    err2 = float(jnp.max(jnp.abs(out_final - ref_final)))
    if not jnp.allclose(out, ref, rtol=1e-5, atol=1e-5):
        raise AssertionError(f"non-final branch mismatch, max abs err = {err1}")
    if not jnp.allclose(out_final, ref_final, rtol=1e-5, atol=1e-5):
        raise AssertionError(f"final branch mismatch, max abs err = {err2}")
    print("KERNEL_OK")
</pallas_src>

<mosaic_0001>
module attributes {stable_mosaic.version = 11 : i64} {
  func.func @_bitparm_kernel(%arg0: i32, %arg1: i32, %arg2: memref<8x128xf32, #tpu.memory_space<vmem>>, %arg3: memref<8x3xf32, #tpu.memory_space<vmem>>, %arg4: memref<8x128xf32, #tpu.memory_space<vmem>>) attributes {dimension_semantics = [#tpu.dimension_semantics<parallel>, #tpu.dimension_semantics<parallel>], iteration_bounds = array<i64: 1, 2>, scalar_prefetch = 0 : i64, scratch_operands = 0 : i64, tpu.core_type = #tpu.core_type<tc>, window_params = [{transform_indices = @transform_0, window_bounds = array<i64: 8, 128>}, {transform_indices = @transform_1, window_bounds = array<i64: 8, 3>}, {transform_indices = @transform_2, window_bounds = array<i64: 8, 128>}]} {
    %c0 = arith.constant 0 : index
    %c0_0 = arith.constant 0 : index
    %0 = vector.load %arg2[%c0, %c0_0] : memref<8x128xf32, #tpu.memory_space<vmem>>, vector<8x128xf32>
    %c0_1 = arith.constant 0 : index
    %c0_2 = arith.constant 0 : index
    %1 = vector.load %arg3[%c0_1, %c0_2] : memref<8x3xf32, #tpu.memory_space<vmem>>, vector<8x3xf32>
    %2 = vector.extract_strided_slice %1 {offsets = [0, 0], sizes = [8, 1], strides = [1, 1]} : vector<8x3xf32> to vector<8x1xf32>
    %3 = vector.extract_strided_slice %1 {offsets = [0, 1], sizes = [8, 1], strides = [1, 1]} : vector<8x3xf32> to vector<8x1xf32>
    %4 = vector.broadcast %2 : vector<8x1xf32> to vector<8x128xf32>
    %5 = arith.mulf %0, %4 : vector<8x128xf32>
    %6 = vector.broadcast %3 : vector<8x1xf32> to vector<8x128xf32>
    %7 = arith.addf %5, %6 : vector<8x128xf32>
    %8 = vector.extract_strided_slice %1 {offsets = [0, 2], sizes = [8, 1], strides = [1, 1]} : vector<8x3xf32> to vector<8x1xf32>
    %9 = math.tanh %7 : vector<8x128xf32>
    %10 = vector.broadcast %8 : vector<8x1xf32> to vector<8x128xf32>
    %11 = arith.mulf %9, %10 : vector<8x128xf32>
    %12 = arith.addf %7, %11 : vector<8x128xf32>
    %c0_3 = arith.constant 0 : index
    %c0_4 = arith.constant 0 : index
    %13 = vector.load %arg4[%c0_3, %c0_4] : memref<8x128xf32, #tpu.memory_space<vmem>>, vector<8x128xf32>
    tpu.vector_store %arg4[%c0_3, %c0_4], %12 {strides = array<i32>} : memref<8x128xf32, #tpu.memory_space<vmem>>, vector<8x128xf32>,
    return
  }
  func.func @transform_0(%arg0: i32, %arg1: i32) -> (i32, i32) {
    %c0_i32 = arith.constant 0 : i32
    return %arg0, %arg1 : i32, i32
  }
  func.func @transform_1(%arg0: i32, %arg1: i32) -> (i32, i32) {
    %c0_i32 = arith.constant 0 : i32
    %c0_i32_0 = arith.constant 0 : i32
    return %arg0, %c0_i32 : i32, i32
  }
  func.func @transform_2(%arg0: i32, %arg1: i32) -> (i32, i32) {
    %c0_i32 = arith.constant 0 : i32
    return %arg0, %arg1 : i32, i32
  }
}

</mosaic_0001>

<llo_original>
// kernel: bitparm.1
$region0: #{bitparm.1}
  #allocation0 [shape = 'u32[]', space=smem, size = 0x4, offset = 0x4, fixed_abs, tag = 'smem constant byte address 0x4 - core index']
  #allocation1 [shape = 'u32[144,128]{1,0:T(1,128)}', space=vmem, size = 0x12000, scoped, tag = 'internal scratch']
  %s0 = inlined_call_operand.vmem [shape: f32[8,256], index: 0, kind: input, shape index: {}]
  %s1 = inlined_call_operand.vmem [shape: f32[8,3], index: 1, kind: input, shape index: {}]
  %s2 = inlined_call_operand.vmem [shape: f32[8,256], index: 2, kind: output, shape index: {}]
  %s3 = sld [smem:[#allocation0]]
  $region41: #{bitparm.1} parent=0
    _
  %s5 = ssub.s32 1, %s3
  %s6 = scalar_select 0, %s5, %s3
  loop: start=0, step=1, limit=4
  $region2: #{bitparm.1} parent=0 // loop_pre_header
    _
  $region3: #{bitparm.1} parent=0 // loop_header
    %s8 = sphi 0, %s12
    %p9 = scmp.ge.s32.totalorder %s8, 4
    %s15 = sphi 0, %s27
    %s16 = sphi 0, %s23
    %s17 = sphi 0, %s15
    %s18 = sphi 0, %s16
    %s19 = sphi 0, %s17
    %s20 = sphi 0, %s18
    %s32 = sphi 0, %s34
    %s35 = sphi 0, %s32
    %s36 = sphi 0, %s35
    %s52 = sphi 0, %s36
    %s58 = sphi 0, %s60
    %s61 = sphi 0, %s58
    %s62 = sphi 0, %s61
    %s78 = sphi 0, %s62
    %s86 = sphi 0, %s88
    %s89 = sphi 0, %s86
    %s90 = sphi 0, %s89
    %s106 = sphi 0, %s90
  $region4: #{bitparm.1} parent=0 // loop_header_branch
    %11 = sbr.rel (%p9) target = $region8
  $region5: #{bitparm.1} parent=0 // loop_body
    %s13 = ssub.s32 %s8, 1
    %s14 = ssub.s32 %s8, 2
    %s21 = sadd.s32 1, %s16
    %p22 = scmp.ge.s32.totalorder %s21, 2
    %s23 = scalar_select %p22, 0, %s21
    %s24 = sadd.s32 1, %s15
    %s25 = scalar_select %p22, %s24, %s15
    %p26 = scmp.ge.s32.totalorder %s25, 1
    %s27 = scalar_select %p26, 0, %s25
    %s28 = ssub.s32 %s15, %s27
    %s29 = ssub.s32 %s16, %s23
    %s30 = sor.u32 %s28, %s29
    %p31 = scmp.eq.s32.totalorder %s30, 0
    %s33 = sadd.s32 %s32, 1
    %s34 = scalar_select %p31, %s32, %s33
    %p37 = pneg %p31
    %p38 = scmp.eq.s32.totalorder %s8, 1
    %p39 = por %p37, %p38
    %p40 = scmp.ne.s32.totalorder %s32, %s35
    %p41 = scmp.eq.s32.totalorder %s8, 0
    %p42 = por %p40, %p41
    %p43 = scmp.ne.s32.totalorder %s32, %s35
    %p44 = scmp.eq.s32.totalorder %s13, 1
    %p45 = por %p43, %p44
    %p46 = scmp.ne.s32.totalorder %s35, %s36
    %p47 = scmp.eq.s32.totalorder %s13, 0
    %p48 = por %p46, %p47
    %p49 = scmp.ne.s32.totalorder %s35, %s36
    %p50 = scmp.eq.s32.totalorder %s14, 1
    %p51 = por %p49, %p50
    %p53 = scmp.ne.s32.totalorder %s36, %s52
    %p54 = scmp.eq.s32.totalorder %s14, 0
    %p55 = por %p53, %p54
    %s56 = ssub.s32 %s15, %s27
    %p57 = scmp.eq.s32.totalorder %s56, 0
    %s59 = sadd.s32 %s58, 1
    %s60 = scalar_select %p57, %s58, %s59
    %p63 = pneg %p57
    %p64 = scmp.eq.s32.totalorder %s8, 1
    %p65 = por %p63, %p64
    %p66 = scmp.ne.s32.totalorder %s58, %s61
    %p67 = scmp.eq.s32.totalorder %s8, 0
    %p68 = por %p66, %p67
    %p69 = scmp.ne.s32.totalorder %s58, %s61
    %p70 = scmp.eq.s32.totalorder %s13, 1
    %p71 = por %p69, %p70
    %p72 = scmp.ne.s32.totalorder %s61, %s62
    %p73 = scmp.eq.s32.totalorder %s13, 0
    %p74 = por %p72, %p73
    %p75 = scmp.ne.s32.totalorder %s61, %s62
    %p76 = scmp.eq.s32.totalorder %s14, 1
    %p77 = por %p75, %p76
    %p79 = scmp.ne.s32.totalorder %s62, %s78
    %p80 = scmp.eq.s32.totalorder %s14, 0
    %p81 = por %p79, %p80
    %s82 = ssub.s32 %s15, %s27
    %s83 = ssub.s32 %s16, %s23
    %s84 = sor.u32 %s82, %s83
    %p85 = scmp.eq.s32.totalorder %s84, 0
    %s87 = sadd.s32 %s86, 1
    %s88 = scalar_select %p85, %s86, %s87
    %p91 = pneg %p85
    %p92 = scmp.eq.s32.totalorder %s8, 1
    %p93 = por %p91, %p92
    %p94 = scmp.ne.s32.totalorder %s86, %s89
    %p95 = scmp.eq.s32.totalorder %s8, 0
    %p96 = por %p94, %p95
    %p97 = scmp.ne.s32.totalorder %s86, %s89
    %p98 = scmp.eq.s32.totalorder %s13, 1
    %p99 = por %p97, %p98
    %p100 = scmp.ne.s32.totalorder %s89, %s90
    %p101 = scmp.eq.s32.totalorder %s13, 0
    %p102 = por %p100, %p101
    %p103 = scmp.ne.s32.totalorder %s89, %s90
    %p104 = scmp.eq.s32.totalorder %s14, 1
    %p105 = por %p103, %p104
    %p107 = scmp.ne.s32.totalorder %s90, %s106
    %p108 = scmp.eq.s32.totalorder %s14, 0
    %p109 = por %p107, %p108
    %p110 = scmp.le.s32.totalorder 1, %s8
    %p111 = scmp.lt.s32.totalorder %s8, 3
    %p112 = pnand %p110, %p111
    %p113 = pneg %p112
    // Predicated region
    $region9: #{bitparm.1} parent=5 // pred_check
      _
    $region10: #{bitparm.1} parent=5 // pred_check_branch
      %115 = sbr.rel (%p112) target = $region12
    $region11: #{bitparm.1} parent=5 // pred_region
      %s116 = ssub.s32 %s8, 1
      // Predicated region
      $region13: #{bitparm.1} parent=11 // pred_check
        %p117 = pneg %p74
      $region14: #{bitparm.1} parent=11 // pred_check_branch
        %119 = sbr.rel (%p117) target = $region16
      $region15: #{bitparm.1} parent=11 // pred_region
        %p120 = scmp.lt.s32.totalorder %s17, 0
        %s121 = scalar_select %p120, %s17, 0
        %s122 = smul.addr %s121, 8
        %s123 = scalar_lea.vmem %s1, %s122
      $region16: #{bitparm.1} parent=11 // pred_fallthru
        _
    $region12: #{bitparm.1} parent=5 // pred_fallthru
      _
    %p124 = scmp.lt.s32.totalorder %s8, 2
    // Predicated region
    $region17: #{bitparm.1} parent=5 // pred_check
      %p125 = pneg %p124
    $region18: #{bitparm.1} parent=5 // pred_check_branch
      %127 = sbr.rel (%p125) target = $region20
    $region19: #{bitparm.1} parent=5 // pred_region
      // Predicated region
      $region21: #{bitparm.1} parent=19 // pred_check
        %p128 = pneg %p42
      $region22: #{bitparm.1} parent=19 // pred_check_branch
        %130 = sbr.rel (%p128) target = $region24
      $region23: #{bitparm.1} parent=19 // pred_region
        %p131 = scmp.lt.s32.totalorder %s15, 0
        %s132 = scalar_select %p131, %s15, 0
        %p133 = scmp.lt.s32.totalorder %s16, 1
        %s134 = scalar_select %p133, %s16, 1
        %s135 = smul.addr %s132, 2
        %s136 = sadd.s32 %s134, %s135
        %s137 = smul.addr %s136, 8
        %s138 = scalar_lea.vmem %s0, %s137
      $region24: #{bitparm.1} parent=19 // pred_fallthru
        _
    $region20: #{bitparm.1} parent=5 // pred_fallthru
      _
    %p139 = scmp.le.s32.totalorder 1, %s8
    %p140 = scmp.lt.s32.totalorder %s8, 3
    %p141 = pnand %p139, %p140
    %p142 = pneg %p141
    // Predicated region
    $region25: #{bitparm.1} parent=5 // pred_check
      _
    $region26: #{bitparm.1} parent=5 // pred_check_branch
      %144 = sbr.rel (%p141) target = $region28
    $region27: #{bitparm.1} parent=5 // pred_region
      %s145 = ssub.s32 %s8, 1
      %p146 = scmp.lt.s32.totalorder %s17, 0
      %s147 = scalar_select %p146, %s17, 0
      %p148 = scmp.lt.s32.totalorder %s18, 1
      %s149 = scalar_select %p148, %s18, 1
      %s150 = smul.addr %s147, 2
      %s151 = sadd.s32 %s149, %s150
      %s152 = smul.addr %s151, 8
      %s153 = scalar_lea.vmem %s0, %s152
      %p154 = pneg %p48
      %p155 = pneg %p45
      %p156 = scmp.lt.s32.totalorder %s17, 0
      %s157 = scalar_select %p156, %s17, 0
      %s158 = smul.addr %s157, 8
      %s159 = scalar_lea.vmem %s1, %s158
      %p160 = pneg %p74
      %p161 = pneg %p71
      %p162 = pneg %p102
      %p163 = pneg %p99
      %p164 = scmp.lt.s32.totalorder %s17, 0
      %s165 = scalar_select %p164, %s17, 0
      %p166 = scmp.lt.s32.totalorder %s18, 1
      %s167 = scalar_select %p166, %s18, 1
      %s168 = smul.addr %s165, 2
      %s169 = sadd.s32 %s167, %s168
      %s170 = smul.addr %s169, 8
      %s171 = scalar_lea.vmem %s2, %s170
      %p172 = scmp.lt.s32.totalorder %s17, 0
      %s173 = scalar_select %p172, %s17, 0
      %p174 = scmp.lt.s32.totalorder %s18, 1
      %s175 = scalar_select %p174, %s18, 1
      %s176 = smul.addr %s173, 2
      %s177 = sadd.s32 %s175, %s176
      %s178 = smul.addr %s177, 8
      %s179 = scalar_lea.vmem %s0, %s178
      %p180 = scmp.lt.s32.totalorder %s17, 0
      %s181 = scalar_select %p180, %s17, 0
      %s182 = smul.addr %s181, 8
      %s183 = scalar_lea.vmem %s1, %s182
      %p184 = scmp.lt.s32.totalorder %s17, 0
      %s185 = scalar_select %p184, %s17, 0
      %p186 = scmp.lt.s32.totalorder %s18, 1
      %s187 = scalar_select %p186, %s18, 1
      %s188 = smul.addr %s185, 2
      %s189 = sadd.s32 %s187, %s188
      %s190 = smul.addr %s189, 8
      %s191 = scalar_lea.vmem %s2, %s190
      %v192 = vld [vmem:[%s179] sm:$0xff]
      %v193 = vld [vmem:[%s183] sm:$0xff]
      %195 = vset.pattern.permute.xlu0 0
      %196 = vperm.xlu0 %195, %v193
      %v197 = vpop.permute.xlu0 %196
      %v199 = vmul.f32 %v192, %v197
      %200 = vset.pattern.permute.xlu0 1
      %201 = vperm.xlu0 %200, %v193
      %v202 = vpop.permute.xlu0 %201
      %v204 = vadd.f32 %v199, %v202
      %v205 = vtanh.pop %v204
      %206 = vset.pattern.permute.xlu0 2
      %207 = vperm.xlu0 %206, %v193
      %v208 = vpop.permute.xlu0 %207
      %v210 = vmul.f32 %v205, %v208
      %v211 = vadd.f32 %v204, %v210
      %212 = vst [vmem:[%s191] sm:$0xff] %v211
      %p213 = scmp.lt.s32.totalorder %s17, 0
      %s214 = scalar_select %p213, %s17, 0
      %p215 = scmp.lt.s32.totalorder %s18, 1
      %s216 = scalar_select %p215, %s18, 1
      %s217 = smul.addr %s214, 2
      %s218 = sadd.s32 %s216, %s217
      %s219 = smul.addr %s218, 8
      %s220 = scalar_lea.vmem %s2, %s219
      // Predicated region
      $region29: #{bitparm.1} parent=27 // pred_check
        %p221 = pneg %p99
      $region30: #{bitparm.1} parent=27 // pred_check_branch
        %223 = sbr.rel (%p221) target = $region32
      $region31: #{bitparm.1} parent=27 // pred_region
        _
      $region32: #{bitparm.1} parent=27 // pred_fallthru
        _
    $region28: #{bitparm.1} parent=5 // pred_fallthru
      _
    %p224 = scmp.le.s32.totalorder 2, %s8
    // Predicated region
    $region33: #{bitparm.1} parent=5 // pred_check
      %p225 = pneg %p224
    $region34: #{bitparm.1} parent=5 // pred_check_branch
      %227 = sbr.rel (%p225) target = $region36
    $region35: #{bitparm.1} parent=5 // pred_region
      %s228 = ssub.s32 %s8, 2
      // Predicated region
      $region37: #{bitparm.1} parent=35 // pred_check
        %p229 = pneg %p105
      $region38: #{bitparm.1} parent=35 // pred_check_branch
        %231 = sbr.rel (%p229) target = $region40
      $region39: #{bitparm.1} parent=35 // pred_region
        %p232 = scmp.lt.s32.totalorder %s19, 0
        %s233 = scalar_select %p232, %s19, 0
        %p234 = scmp.lt.s32.totalorder %s20, 1
        %s235 = scalar_select %p234, %s20, 1
        %s236 = smul.addr %s233, 2
        %s237 = sadd.s32 %s235, %s236
        %s238 = smul.addr %s237, 8
        %s239 = scalar_lea.vmem %s2, %s238
      $region40: #{bitparm.1} parent=35 // pred_fallthru
        _
    $region36: #{bitparm.1} parent=5 // pred_fallthru
      _
  $region6: #{bitparm.1} parent=0 // loop_footer
    %s12 = sadd.s32 1, %s8
  $region7: #{bitparm.1} parent=0 // loop_footer_branch
    %7 = sbr.rel target = $region3
  $region8: #{bitparm.1} parent=0 // loop_exit
    _

</llo_original>
